<compile_context>
chip_gen: v5e
topology: v5e:2x2
jax: 0.10.0
libtpu: 0.0.40
codegen_flags: <defaults>
</compile_context>

<pallas_src>
import functools

import jax
import jax.numpy as jnp
from jax.experimental import pallas as pl
from jax.experimental.pallas import tpu as pltpu


LANE = 128


def _round_up(x, m):
    return ((x + m - 1) // m) * m


def _pick_tile(M, max_tile=512):
    """Pick a lane-aligned M tile (multiple of 128) and the padded M."""
    Mp = _round_up(M, LANE)
    for t in (max_tile, 256, 128):
        if Mp % t == 0:
            return t, Mp
    return Mp, Mp  # unreachable: Mp is always a multiple of 128


# ---------------------------------------------------------------------------
# Pallas kernels.  All matmuls use the transposed layout:
#   out(C_out, M_tile) = act( W(C_out, K) @ X(K, M_tile) + b )
# so the output's last dim (lanes) is the spatial axis -> dense vst.
# ---------------------------------------------------------------------------
def _matmul_bias_act_kernel(x_ref, w_ref, b_ref, o_ref, *, apply_relu):
    acc = jnp.dot(w_ref[...], x_ref[...], preferred_element_type=jnp.float32)
    acc = acc + b_ref[...]               # (C_out, 1) broadcasts over lanes
    if apply_relu:
        acc = jnp.maximum(acc, 0.0)
    o_ref[...] = acc.astype(o_ref.dtype)


def _conv_cls_fused_kernel(x_ref, w2_ref, b2_ref, wc_ref, bc_ref, o_ref):
    # backbone stage 2 (conv as matmul) + bias + ReLU
    h = jnp.dot(w2_ref[...], x_ref[...], preferred_element_type=jnp.float32)
    h = jnp.maximum(h + b2_ref[...], 0.0)
    # fused 1x1 classifier: tiny extra matmul, hides under MXU slack and
    # removes one HBM round trip of the (c_mid2, M) activation.
    logits = jnp.dot(wc_ref[...], h.astype(jnp.bfloat16),
                     preferred_element_type=jnp.float32)
    o_ref[...] = (logits + bc_ref[...]).astype(o_ref.dtype)


# ---------------------------------------------------------------------------
# Pallas wrappers (M-tiled, parallel grid, bf16 operands, fp32 accumulate).
# ---------------------------------------------------------------------------
def matmul_bias_act_T(x_T, w_T, b, *, relu, out_dtype=jnp.float32):
    """x_T: (K, M) bf16, w_T: (C_out, K) bf16, b: (C_out,) -> (C_out, M)."""
    K, M = x_T.shape
    c_out, K2 = w_T.shape
    assert K == K2
    tile_m, Mp = _pick_tile(M)
    if Mp != M:
        x_T = jnp.pad(x_T, ((0, 0), (0, Mp - M)))
    b2 = b.reshape(c_out, 1).astype(jnp.float32)

    kernel = functools.partial(_matmul_bias_act_kernel, apply_relu=relu)
    bytes_acc = (x_T.size * x_T.dtype.itemsize
                 + w_T.size * w_T.dtype.itemsize
                 + b2.size * 4
                 + c_out * Mp * jnp.dtype(out_dtype).itemsize)
    y = pl.pallas_call(
        kernel,
        out_shape=jax.ShapeDtypeStruct((c_out, Mp), out_dtype),
        grid=(Mp // tile_m,),
        in_specs=[
            pl.BlockSpec((K, tile_m), lambda i: (0, i)),     # M-tiled input
            pl.BlockSpec((c_out, K), lambda i: (0, 0)),      # weights resident
            pl.BlockSpec((c_out, 1), lambda i: (0, 0)),      # bias resident
        ],
        out_specs=pl.BlockSpec((c_out, tile_m), lambda i: (0, i)),
        compiler_params=pltpu.CompilerParams(
            dimension_semantics=("parallel",)),
        cost_estimate=pl.CostEstimate(
            flops=2 * Mp * K * c_out, transcendentals=0,
            bytes_accessed=bytes_acc),
    )(x_T, w_T, b2)
    return y[:, :M]


def conv_cls_fused_matmul_T(x_T, w2_T, b2, wc_T, bc, out_dtype=jnp.float32):
    """Fused: relu(w2_T @ x_T + b2) then classifier wc_T @ (.) + bc."""
    K, M = x_T.shape
    c_mid, K2 = w2_T.shape
    n_cls, c_mid2 = wc_T.shape
    assert K == K2 and c_mid == c_mid2
    tile_m, Mp = _pick_tile(M)
    if Mp != M:
        x_T = jnp.pad(x_T, ((0, 0), (0, Mp - M)))
    b2v = b2.reshape(c_mid, 1).astype(jnp.float32)
    bcv = bc.reshape(n_cls, 1).astype(jnp.float32)

    bytes_acc = (x_T.size * x_T.dtype.itemsize
                 + w2_T.size * 2 + wc_T.size * 2
                 + (b2v.size + bcv.size) * 4
                 + n_cls * Mp * jnp.dtype(out_dtype).itemsize)
    y = pl.pallas_call(
        _conv_cls_fused_kernel,
        out_shape=jax.ShapeDtypeStruct((n_cls, Mp), out_dtype),
        grid=(Mp // tile_m,),
        in_specs=[
            pl.BlockSpec((K, tile_m), lambda i: (0, i)),
            pl.BlockSpec((c_mid, K), lambda i: (0, 0)),
            pl.BlockSpec((c_mid, 1), lambda i: (0, 0)),
            pl.BlockSpec((n_cls, c_mid), lambda i: (0, 0)),
            pl.BlockSpec((n_cls, 1), lambda i: (0, 0)),
        ],
        out_specs=pl.BlockSpec((n_cls, tile_m), lambda i: (0, i)),
        compiler_params=pltpu.CompilerParams(
            dimension_semantics=("parallel",)),
        cost_estimate=pl.CostEstimate(
            flops=2 * Mp * K * c_mid + 2 * Mp * c_mid * n_cls,
            transcendentals=0, bytes_accessed=bytes_acc),
    )(x_T, w2_T, b2v, wc_T, bcv)
    return y[:, :M]


# ---------------------------------------------------------------------------
# Conv glue: im2col in transposed (channels-first) layout.
# ---------------------------------------------------------------------------
def _im2col_T(x_cnhw, kh, kw, stride, pad):
    """x: (C, N, H, W) -> cols (kh*kw*C, N*Ho*Wo), tap-major then channel."""
    # TODO(synk): tap loop still materialized in HBM (kh*kw expansion); folding
    # it into the kernel as a K-reduction grid axis needs strided index_maps.
    x = jnp.pad(x_cnhw, ((0, 0), (0, 0), (pad, pad), (pad, pad)))
    c, n, h, w = x.shape
    ho = (h - kh) // stride + 1
    wo = (w - kw) // stride + 1
    taps = []
    for i in range(kh):
        for j in range(kw):
            taps.append(
                x[:, :, i:i + ho * stride:stride, j:j + wo * stride:stride])
    cols = jnp.stack(taps, axis=0)                  # (kh*kw, C, N, Ho, Wo)
    return cols.reshape(kh * kw * c, n * ho * wo), (n, ho, wo)


def _flatten_w_T(w):
    """(kh, kw, C_in, C_out) -> (C_out, kh*kw*C_in), matching _im2col_T order."""
    kh, kw, c_in, c_out = w.shape
    return jnp.transpose(w, (3, 0, 1, 2)).reshape(c_out, kh * kw * c_in)


def conv2d_T_pallas(x_cnhw, w, b, *, stride, pad, relu):
    kh, kw, c_in, c_out = w.shape
    cols, (n, ho, wo) = _im2col_T(x_cnhw, kh, kw, stride, pad)
    y = matmul_bias_act_T(cols.astype(jnp.bfloat16),
                          _flatten_w_T(w).astype(jnp.bfloat16),
                          b, relu=relu)
    return y.reshape(c_out, n, ho, wo)


def conv_cls_fused_pallas(x_cnhw, w_conv, b_conv, w_cls, b_cls, *, stride, pad):
    kh, kw, c_in, c_mid = w_conv.shape
    assert w_cls.shape[:2] == (1, 1) and w_cls.shape[2] == c_mid
    n_cls = w_cls.shape[3]
    cols, (n, ho, wo) = _im2col_T(x_cnhw, kh, kw, stride, pad)
    y = conv_cls_fused_matmul_T(
        cols.astype(jnp.bfloat16),
        _flatten_w_T(w_conv).astype(jnp.bfloat16), b_conv,
        _flatten_w_T(w_cls).astype(jnp.bfloat16), b_cls)
    return y.reshape(n_cls, n, ho, wo)


# ---------------------------------------------------------------------------
# Synthetic segmentation model + TraceWrapper forward
# ---------------------------------------------------------------------------
def init_params(key, c_in=3, c_mid1=8, c_mid2=16, num_classes=5):
    k1, k2, k3 = jax.random.split(key, 3)
    scale = 0.1
    return {
        "w1": scale * jax.random.normal(k1, (3, 3, c_in, c_mid1), jnp.float32),
        "b1": jnp.zeros((c_mid1,), jnp.float32),
        "w2": scale * jax.random.normal(k2, (3, 3, c_mid1, c_mid2), jnp.float32),
        "b2": jnp.zeros((c_mid2,), jnp.float32),
        "w_cls": scale * jax.random.normal(k3, (1, 1, c_mid2, num_classes), jnp.float32),
        "b_cls": jnp.zeros((num_classes,), jnp.float32),
    }


def segmentation_model(params, x_nchw):
    """Returns a dict with key 'out', like torchvision segmentation models."""
    n, c, h, w = x_nchw.shape
    # Channels-on-sublanes / (batch*spatial)-on-lanes layout: (C, N, H, W).
    x = jnp.transpose(x_nchw, (1, 0, 2, 3))

    # Backbone stage 1: 3x3 stride-2 conv + ReLU (Pallas fused matmul).
    x = conv2d_T_pallas(x, params["w1"], params["b1"], stride=2, pad=1, relu=True)

    # Backbone stage 2 + 1x1 classifier fused into one Pallas kernel.
    logits = conv_cls_fused_pallas(x, params["w2"], params["b2"],
                                   params["w_cls"], params["b_cls"],
                                   stride=2, pad=1)  # (num_classes, N, H/4, W/4)

    # Upsample logits back to input spatial size, matching
    # F.interpolate(mode='bilinear', align_corners=False).
    # TODO(synk): bilinear upsample kept in plain JAX (jax.image.resize); a
    # fused Pallas 4-tap upsample on this lane-dense layout is a further win.
    n_cls = logits.shape[0]
    up = jax.image.resize(logits, (n_cls, n, h, w), method="bilinear")

    out = jnp.transpose(up, (1, 0, 2, 3))  # (C, N, H, W) -> NCHW
    return {"out": out, "aux": None}


@jax.jit
def trace_wrapper_forward(params, x_nchw):
    """TraceWrapper.forward: run the model, return result['out']."""
    result = segmentation_model(params, x_nchw)
    return result["out"]


if __name__ == "__main__":
    key = jax.random.PRNGKey(0)
    kx, kp = jax.random.split(key)

    # Small PyTorch-style NCHW image batch.
    x = jax.random.normal(kx, (2, 3, 16, 16), jnp.float32)
    params = init_params(kp)

    out = trace_wrapper_forward(params, x)
    out = jax.block_until_ready(out)

    assert out.shape == (2, 5, 16, 16), out.shape
    assert out.dtype == jnp.float32, out.dtype
    print("KERNEL_OK")
</pallas_src>

<mosaic_0001>
module attributes {stable_mosaic.version = 11 : i64} {
  func.func @_matmul_bias_act_kernel(%arg0: i32, %arg1: memref<27x128xbf16, #tpu.memory_space<vmem>>, %arg2: memref<8x27xbf16, #tpu.memory_space<vmem>>, %arg3: memref<8x1xf32, #tpu.memory_space<vmem>>, %arg4: memref<8x128xf32, #tpu.memory_space<vmem>>) attributes {dimension_semantics = [#tpu.dimension_semantics<parallel>], iteration_bounds = array<i64: 1>, scalar_prefetch = 0 : i64, scratch_operands = 0 : i64, tpu.core_type = #tpu.core_type<tc>, window_params = [{transform_indices = @transform_0, window_bounds = array<i64: 27, 128>}, {pipeline_mode = #tpu.pipeline_mode<synchronous>, transform_indices = @transform_1, window_bounds = array<i64: 8, 27>}, {pipeline_mode = #tpu.pipeline_mode<synchronous>, transform_indices = @transform_2, window_bounds = array<i64: 8, 1>}, {transform_indices = @transform_3, window_bounds = array<i64: 8, 128>}]} {
    %c0 = arith.constant 0 : index
    %c0_0 = arith.constant 0 : index
    %0 = vector.load %arg2[%c0, %c0_0] : memref<8x27xbf16, #tpu.memory_space<vmem>>, vector<8x27xbf16>
    %c0_1 = arith.constant 0 : index
    %c0_2 = arith.constant 0 : index
    %1 = vector.load %arg1[%c0_1, %c0_2] : memref<27x128xbf16, #tpu.memory_space<vmem>>, vector<27x128xbf16>
    %cst = arith.constant dense<0.000000e+00> : vector<8x128xf32>
    %2 = tpu.matmul %0, %1, %cst {dimension_numbers = #tpu.dot_dimension_numbers<[1], [0], [0], [1], [0, 0, 1, 1], [], []>} : vector<8x27xbf16>, vector<27x128xbf16>, vector<8x128xf32> -> vector<8x128xf32>
    %c0_3 = arith.constant 0 : index
    %c0_4 = arith.constant 0 : index
    %3 = vector.load %arg3[%c0_3, %c0_4] : memref<8x1xf32, #tpu.memory_space<vmem>>, vector<8x1xf32>
    %4 = vector.broadcast %3 : vector<8x1xf32> to vector<8x128xf32>
    %5 = arith.addf %2, %4 : vector<8x128xf32>
    %cst_5 = arith.constant 0.000000e+00 : f32
    %6 = vector.broadcast %cst_5 : f32 to vector<8x128xf32>
    %7 = arith.maximumf %5, %6 : vector<8x128xf32>
    %c0_6 = arith.constant 0 : index
    %c0_7 = arith.constant 0 : index
    %8 = vector.load %arg4[%c0_6, %c0_7] : memref<8x128xf32, #tpu.memory_space<vmem>>, vector<8x128xf32>
    tpu.vector_store %arg4[%c0_6, %c0_7], %7 {strides = array<i32>} : memref<8x128xf32, #tpu.memory_space<vmem>>, vector<8x128xf32>,
    return
  }
  func.func @transform_0(%arg0: i32) -> (i32, i32) {
    %c0_i32 = arith.constant 0 : i32
    %c0_i32_0 = arith.constant 0 : i32
    return %c0_i32, %arg0 : i32, i32
  }
  func.func @transform_1(%arg0: i32) -> (i32, i32) {
    %c0_i32 = arith.constant 0 : i32
    %c0_i32_0 = arith.constant 0 : i32
    %c0_i32_1 = arith.constant 0 : i32
    return %c0_i32, %c0_i32_0 : i32, i32
  }
  func.func @transform_2(%arg0: i32) -> (i32, i32) {
    %c0_i32 = arith.constant 0 : i32
    %c0_i32_0 = arith.constant 0 : i32
    %c0_i32_1 = arith.constant 0 : i32
    return %c0_i32, %c0_i32_0 : i32, i32
  }
  func.func @transform_3(%arg0: i32) -> (i32, i32) {
    %c0_i32 = arith.constant 0 : i32
    %c0_i32_0 = arith.constant 0 : i32
    return %c0_i32, %arg0 : i32, i32
  }
}

module attributes {stable_mosaic.version = 11 : i64} {
  func.func @_conv_cls_fused_kernel(%arg0: i32, %arg1: memref<72x128xbf16, #tpu.memory_space<vmem>>, %arg2: memref<16x72xbf16, #tpu.memory_space<vmem>>, %arg3: memref<16x1xf32, #tpu.memory_space<vmem>>, %arg4: memref<5x16xbf16, #tpu.memory_space<vmem>>, %arg5: memref<5x1xf32, #tpu.memory_space<vmem>>, %arg6: memref<5x128xf32, #tpu.memory_space<vmem>>) attributes {dimension_semantics = [#tpu.dimension_semantics<parallel>], iteration_bounds = array<i64: 1>, scalar_prefetch = 0 : i64, scratch_operands = 0 : i64, tpu.core_type = #tpu.core_type<tc>, window_params = [{transform_indices = @transform_0, window_bounds = array<i64: 72, 128>}, {pipeline_mode = #tpu.pipeline_mode<synchronous>, transform_indices = @transform_1, window_bounds = array<i64: 16, 72>}, {pipeline_mode = #tpu.pipeline_mode<synchronous>, transform_indices = @transform_2, window_bounds = array<i64: 16, 1>}, {pipeline_mode = #tpu.pipeline_mode<synchronous>, transform_indices = @transform_3, window_bounds = array<i64: 5, 16>}, {pipeline_mode = #tpu.pipeline_mode<synchronous>, transform_indices = @transform_4, window_bounds = array<i64: 5, 1>}, {transform_indices = @transform_5, window_bounds = array<i64: 5, 128>}]} {
    %c0 = arith.constant 0 : index
    %c0_0 = arith.constant 0 : index
    %0 = vector.load %arg2[%c0, %c0_0] : memref<16x72xbf16, #tpu.memory_space<vmem>>, vector<16x72xbf16>
    %c0_1 = arith.constant 0 : index
    %c0_2 = arith.constant 0 : index
    %1 = vector.load %arg1[%c0_1, %c0_2] : memref<72x128xbf16, #tpu.memory_space<vmem>>, vector<72x128xbf16>
    %cst = arith.constant dense<0.000000e+00> : vector<16x128xf32>
    %2 = tpu.matmul %0, %1, %cst {dimension_numbers = #tpu.dot_dimension_numbers<[1], [0], [0], [1], [0, 0, 1, 1], [], []>} : vector<16x72xbf16>, vector<72x128xbf16>, vector<16x128xf32> -> vector<16x128xf32>
    %c0_3 = arith.constant 0 : index
    %c0_4 = arith.constant 0 : index
    %3 = vector.load %arg3[%c0_3, %c0_4] : memref<16x1xf32, #tpu.memory_space<vmem>>, vector<16x1xf32>
    %4 = vector.broadcast %3 : vector<16x1xf32> to vector<16x128xf32>
    %5 = arith.addf %2, %4 : vector<16x128xf32>
    %cst_5 = arith.constant 0.000000e+00 : f32
    %6 = vector.broadcast %cst_5 : f32 to vector<16x128xf32>
    %7 = arith.maximumf %5, %6 : vector<16x128xf32>
    %c0_6 = arith.constant 0 : index
    %c0_7 = arith.constant 0 : index
    %8 = vector.load %arg4[%c0_6, %c0_7] : memref<5x16xbf16, #tpu.memory_space<vmem>>, vector<5x16xbf16>
    %9 = arith.truncf %7 : vector<16x128xf32> to vector<16x128xbf16>
    %cst_8 = arith.constant dense<0.000000e+00> : vector<5x128xf32>
    %10 = tpu.matmul %8, %9, %cst_8 {dimension_numbers = #tpu.dot_dimension_numbers<[1], [0], [0], [1], [0, 0, 1, 1], [], []>} : vector<5x16xbf16>, vector<16x128xbf16>, vector<5x128xf32> -> vector<5x128xf32>
    %c0_9 = arith.constant 0 : index
    %c0_10 = arith.constant 0 : index
    %11 = vector.load %arg5[%c0_9, %c0_10] : memref<5x1xf32, #tpu.memory_space<vmem>>, vector<5x1xf32>
    %12 = vector.broadcast %11 : vector<5x1xf32> to vector<5x128xf32>
    %13 = arith.addf %10, %12 : vector<5x128xf32>
    %c0_11 = arith.constant 0 : index
    %c0_12 = arith.constant 0 : index
    %14 = vector.load %arg6[%c0_11, %c0_12] : memref<5x128xf32, #tpu.memory_space<vmem>>, vector<5x128xf32>
    tpu.vector_store %arg6[%c0_11, %c0_12], %13 {strides = array<i32>} : memref<5x128xf32, #tpu.memory_space<vmem>>, vector<5x128xf32>,
    return
  }
  func.func @transform_0(%arg0: i32) -> (i32, i32) {
    %c0_i32 = arith.constant 0 : i32
    %c0_i32_0 = arith.constant 0 : i32
    return %c0_i32, %arg0 : i32, i32
  }
  func.func @transform_1(%arg0: i32) -> (i32, i32) {
    %c0_i32 = arith.constant 0 : i32
    %c0_i32_0 = arith.constant 0 : i32
    %c0_i32_1 = arith.constant 0 : i32
    return %c0_i32, %c0_i32_0 : i32, i32
  }
  func.func @transform_2(%arg0: i32) -> (i32, i32) {
    %c0_i32 = arith.constant 0 : i32
    %c0_i32_0 = arith.constant 0 : i32
    %c0_i32_1 = arith.constant 0 : i32
    return %c0_i32, %c0_i32_0 : i32, i32
  }
  func.func @transform_3(%arg0: i32) -> (i32, i32) {
    %c0_i32 = arith.constant 0 : i32
    %c0_i32_0 = arith.constant 0 : i32
    %c0_i32_1 = arith.constant 0 : i32
    return %c0_i32, %c0_i32_0 : i32, i32
  }
  func.func @transform_4(%arg0: i32) -> (i32, i32) {
    %c0_i32 = arith.constant 0 : i32
    %c0_i32_0 = arith.constant 0 : i32
    %c0_i32_1 = arith.constant 0 : i32
    return %c0_i32, %c0_i32_0 : i32, i32
  }
  func.func @transform_5(%arg0: i32) -> (i32, i32) {
    %c0_i32 = arith.constant 0 : i32
    %c0_i32_0 = arith.constant 0 : i32
    return %c0_i32, %arg0 : i32, i32
  }
}

</mosaic_0001>

<llo_original>
// kernel: trace_wrapper_forward.2
$region0: #{trace_wrapper_forward.2}
  #allocation0 [shape = 'u32[]', space=smem, size = 0x4, offset = 0x4, fixed_abs, tag = 'smem constant byte address 0x4 - core index']
  #allocation1 [shape = 'u32[72,128]{1,0:T(1,128)}', space=vmem, size = 0x9000, scoped, tag = 'internal scratch']
  %s0 = inlined_call_operand.vmem [shape: bf16[27,128], index: 0, kind: input, shape index: {}]
  %s1 = inlined_call_operand.vmem [shape: bf16[8,27], index: 1, kind: input, shape index: {}]
  %s2 = inlined_call_operand.vmem [shape: f32[8,1], index: 2, kind: input, shape index: {}]
  %s3 = inlined_call_operand.vmem [shape: f32[8,128], index: 3, kind: output, shape index: {}]
  %s4 = sld [smem:[#allocation0]]
  $region22: #{trace_wrapper_forward.2} parent=0
    _
  %s6 = ssub.s32 1, %s4
  %s7 = scalar_select 0, %s6, %s4
  // Predicated region
  $region2: #{trace_wrapper_forward.2} parent=0 // pred_check
    _
  $region3: #{trace_wrapper_forward.2} parent=0 // pred_check_branch
    %9 = sbr.rel (0) target = $region5
  $region4: #{trace_wrapper_forward.2} parent=0 // pred_region
    _
  $region5: #{trace_wrapper_forward.2} parent=0 // pred_fallthru
    _
  // Predicated region
  $region6: #{trace_wrapper_forward.2} parent=0 // pred_check
    _
  $region7: #{trace_wrapper_forward.2} parent=0 // pred_check_branch
    %11 = sbr.rel (0) target = $region9
  $region8: #{trace_wrapper_forward.2} parent=0 // pred_region
    _
  $region9: #{trace_wrapper_forward.2} parent=0 // pred_fallthru
    _
  // Predicated region
  $region10: #{trace_wrapper_forward.2} parent=0 // pred_check
    _
  $region11: #{trace_wrapper_forward.2} parent=0 // pred_check_branch
    %13 = sbr.rel (0) target = $region13
  $region12: #{trace_wrapper_forward.2} parent=0 // pred_region
    _
  $region13: #{trace_wrapper_forward.2} parent=0 // pred_fallthru
    _
  %v15 = vld [vmem:[%s1] sm:$0xf]
  %v16 = vld [vmem:[%s0] sm:$0xf]
  %v17 = vld [vmem:[%s0 + $0x4] sm:$0xf]
  %v18 = vld [vmem:[%s0 + $0x8] sm:$0xf]
  %v19 = vld [vmem:[%s0 + $0xc] sm:$0x3]
  %v20 = vld [vmem:[%s2] sm:$0xff]
  %22 = vset.pattern.permute.xlu0 0
  %23 = vperm.xlu0 %22, %v20
  %v24 = vpop.permute.xlu0 %23
  %v30 = vunpack.c.l.b16 %v16
  %v31 = vunpack.c.l.b16 %v17
  %v32 = vunpack.c.l.b16 %v18
  %v33 = vunpack.c.l.b16 %v19
  %v34 = vpack.c.b16 %v31, %v30
  %v35 = vpack.c.b16 %v33, %v32
  %vm37 = vcmask 220160
  %v39 = vsel %vm37, %v15, 0
  %vm41 = vcmask 1044480
  %vm42 = vcmask 1045504
  %v43 = vsel %vm41, 4294967295, 65535
  %v44 = vsel %vm42, %v43, 0
  %v46 = vand.u32 %v35, %v44
  %48 = vmatpush.bf16.msra.mxu0 0
  %49 = vmatpush.bf16.msra.mxu0 0
  %50 = vmatpush.bf16.msra.mxu0 0
  %51 = vmatpush.bf16.msra.mxu0 0
  %52 = vmatpush.bf16.msra.mxu0 0
  %53 = vmatpush.bf16.msra.mxu0 0
  %54 = vmatpush.bf16.msra.mxu0 %v46
  %55 = vmatpush.bf16.msra.mxu0 %v34
  %56 = vmatmul.bf16.gmra.mxu0 %v39
  %v57 = vpop.f32.mrf.mxu0
  %v58 = vadd.f32 %v24, %v57
  %v59 = vpop.f32.mrf.mxu0
  %60 = vdwg.mxu0
  %v61 = vmax.f32 %v58, 0.0
  %62 = vst [vmem:[%s3] sm:$0xff] %v61
  // Predicated region
  $region14: #{trace_wrapper_forward.2} parent=0 // pred_check
    _
  $region15: #{trace_wrapper_forward.2} parent=0 // pred_check_branch
    %64 = sbr.rel (0) target = $region17
  $region16: #{trace_wrapper_forward.2} parent=0 // pred_region
    _
  $region17: #{trace_wrapper_forward.2} parent=0 // pred_fallthru
    _
  // Predicated region
  $region18: #{trace_wrapper_forward.2} parent=0 // pred_check
    _
  $region19: #{trace_wrapper_forward.2} parent=0 // pred_check_branch
    %66 = sbr.rel (0) target = $region21
  $region20: #{trace_wrapper_forward.2} parent=0 // pred_region
    _
  $region21: #{trace_wrapper_forward.2} parent=0 // pred_fallthru
    _

// kernel: trace_wrapper_forward.3
$region0: #{trace_wrapper_forward.3}
  #allocation0 [shape = 'u32[]', space=smem, size = 0x4, offset = 0x4, fixed_abs, tag = 'smem constant byte address 0x4 - core index']
  #allocation1 [shape = 'u32[72,128]{1,0:T(1,128)}', space=vmem, size = 0x9000, scoped, tag = 'internal scratch']
  %s0 = inlined_call_operand.vmem [shape: bf16[72,128], index: 0, kind: input, shape index: {}]
  %s1 = inlined_call_operand.vmem [shape: bf16[16,72], index: 1, kind: input, shape index: {}]
  %s2 = inlined_call_operand.vmem [shape: f32[16,1], index: 2, kind: input, shape index: {}]
  %s3 = inlined_call_operand.vmem [shape: bf16[5,16], index: 3, kind: input, shape index: {}]
  %s4 = inlined_call_operand.vmem [shape: f32[5,1], index: 4, kind: input, shape index: {}]
  %s5 = inlined_call_operand.vmem [shape: f32[5,128], index: 5, kind: output, shape index: {}]
  %s6 = sld [smem:[#allocation0]]
  $region30: #{trace_wrapper_forward.3} parent=0
    _
  %s8 = ssub.s32 1, %s6
  %s9 = scalar_select 0, %s8, %s6
  // Predicated region
  $region2: #{trace_wrapper_forward.3} parent=0 // pred_check
    _
  $region3: #{trace_wrapper_forward.3} parent=0 // pred_check_branch
    %11 = sbr.rel (0) target = $region5
  $region4: #{trace_wrapper_forward.3} parent=0 // pred_region
    _
  $region5: #{trace_wrapper_forward.3} parent=0 // pred_fallthru
    _
  // Predicated region
  $region6: #{trace_wrapper_forward.3} parent=0 // pred_check
    _
  $region7: #{trace_wrapper_forward.3} parent=0 // pred_check_branch
    %13 = sbr.rel (0) target = $region9
  $region8: #{trace_wrapper_forward.3} parent=0 // pred_region
    _
  $region9: #{trace_wrapper_forward.3} parent=0 // pred_fallthru
    _
  // Predicated region
  $region10: #{trace_wrapper_forward.3} parent=0 // pred_check
    _
  $region11: #{trace_wrapper_forward.3} parent=0 // pred_check_branch
    %15 = sbr.rel (0) target = $region13
  $region12: #{trace_wrapper_forward.3} parent=0 // pred_region
    _
  $region13: #{trace_wrapper_forward.3} parent=0 // pred_fallthru
    _
  // Predicated region
  $region14: #{trace_wrapper_forward.3} parent=0 // pred_check
    _
  $region15: #{trace_wrapper_forward.3} parent=0 // pred_check_branch
    %17 = sbr.rel (0) target = $region17
  $region16: #{trace_wrapper_forward.3} parent=0 // pred_region
    _
  $region17: #{trace_wrapper_forward.3} parent=0 // pred_fallthru
    _
  // Predicated region
  $region18: #{trace_wrapper_forward.3} parent=0 // pred_check
    _
  $region19: #{trace_wrapper_forward.3} parent=0 // pred_check_branch
    %19 = sbr.rel (0) target = $region21
  $region20: #{trace_wrapper_forward.3} parent=0 // pred_region
    _
  $region21: #{trace_wrapper_forward.3} parent=0 // pred_fallthru
    _
  %v21 = vld [vmem:[%s1] sm:$0xf]
  %v22 = vld [vmem:[%s1 + $0x4] sm:$0xf]
  %v23 = vld [vmem:[%s0] sm:$0xf]
  %v24 = vld [vmem:[%s0 + $0x4] sm:$0xf]
  %v25 = vld [vmem:[%s0 + $0x8] sm:$0xf]
  %v26 = vld [vmem:[%s0 + $0xc] sm:$0xf]
  %v27 = vld [vmem:[%s0 + $0x10] sm:$0xf]
  %v28 = vld [vmem:[%s0 + $0x14] sm:$0xf]
  %v29 = vld [vmem:[%s0 + $0x18] sm:$0xf]
  %v30 = vld [vmem:[%s0 + $0x1c] sm:$0xf]
  %v31 = vld [vmem:[%s0 + $0x20] sm:$0xf]
  %v32 = vld [vmem:[%s2] sm:$0xff]
  %v33 = vld [vmem:[%s2 + $0x8] sm:$0xff]
  %35 = vset.pattern.permute.xlu0 0
  %36 = vperm.xlu0 %35, %v32
  %v37 = vpop.permute.xlu0 %36
  %40 = vset.pattern.permute.xlu0 0
  %41 = vperm.xlu0 %40, %v33
  %v42 = vpop.permute.xlu0 %41
  %v46 = vunpack.c.l.b16 %v21
  %v47 = vunpack.c.l.b16 %v22
  %v48 = vpack.c.b16 %v47, %v46
  %v58 = vunpack.c.l.b16 %v23
  %v59 = vunpack.c.l.b16 %v24
  %v60 = vunpack.c.l.b16 %v25
  %v61 = vunpack.c.l.b16 %v26
  %v62 = vunpack.c.l.b16 %v27
  %v63 = vunpack.c.l.b16 %v28
  %v64 = vunpack.c.l.b16 %v29
  %v65 = vunpack.c.l.b16 %v30
  %v66 = vunpack.c.l.b16 %v31
  %v67 = vpack.c.b16 %v59, %v58
  %v68 = vpack.c.b16 %v61, %v60
  %v69 = vpack.c.b16 %v63, %v62
  %v70 = vpack.c.b16 %v65, %v64
  %v71 = vpack.c.b16 %v66, %v66
  %vm76 = vcmask 588800
  %v78 = vsel %vm76, %v48, 0
  %vm80 = vcmask 1043456
  %v82 = vsel %vm80, %v71, 0
  %84 = vmatpush.bf16.msra.mxu0 0
  %85 = vmatpush.bf16.msra.mxu0 0
  %86 = vmatpush.bf16.msra.mxu0 0
  %87 = vmatpush.bf16.msra.mxu0 %v82
  %88 = vmatpush.bf16.msra.mxu0 %v70
  %89 = vmatpush.bf16.msra.mxu0 %v69
  %90 = vmatpush.bf16.msra.mxu0 %v68
  %91 = vmatpush.bf16.msra.mxu0 %v67
  %92 = vmatmul.bf16.gmra.mxu0 %v78
  %v93 = vpop.f32.mrf.mxu0
  %v94 = vadd.f32 %v37, %v93
  %v95 = vpop.f32.mrf.mxu0
  %v96 = vadd.f32 %v42, %v95
  %97 = vdwg.mxu0
  %v98 = vmax.f32 %v94, 0.0
  %v99 = vmax.f32 %v96, 0.0
  %v100 = vld [vmem:[%s3] sm:$0x7]
  %v101 = vpack.c.bf16 %v99, %v98
  %v102 = vld [vmem:[%s4] sm:$0x1f]
  %104 = vset.pattern.permute.xlu0 0
  %105 = vperm.xlu0 %104, %v102
  %v106 = vpop.permute.xlu0 %105
  %vm108 = vcmask 130048
  %v110 = vsel %vm108, %v100, 0
  %112 = vmatpush.bf16.msra.mxu0 0
  %113 = vmatpush.bf16.msra.mxu0 0
  %114 = vmatpush.bf16.msra.mxu0 0
  %115 = vmatpush.bf16.msra.mxu0 0
  %116 = vmatpush.bf16.msra.mxu0 0
  %117 = vmatpush.bf16.msra.mxu0 0
  %118 = vmatpush.bf16.msra.mxu0 0
  %119 = vmatpush.bf16.msra.mxu0 %v101
  %120 = vmatmul.bf16.gmra.mxu0 %v110
  %v121 = vpop.f32.mrf.mxu0
  %v122 = vadd.f32 %v106, %v121
  %v123 = vpop.f32.mrf.mxu0
  %124 = vdwg.mxu0
  %125 = vst [vmem:[%s5] sm:$0x1f] %v122
  // Predicated region
  $region22: #{trace_wrapper_forward.3} parent=0 // pred_check
    _
  $region23: #{trace_wrapper_forward.3} parent=0 // pred_check_branch
    %127 = sbr.rel (0) target = $region25
  $region24: #{trace_wrapper_forward.3} parent=0 // pred_region
    _
  $region25: #{trace_wrapper_forward.3} parent=0 // pred_fallthru
    _
  // Predicated region
  $region26: #{trace_wrapper_forward.3} parent=0 // pred_check
    _
  $region27: #{trace_wrapper_forward.3} parent=0 // pred_check_branch
    %129 = sbr.rel (0) target = $region29
  $region28: #{trace_wrapper_forward.3} parent=0 // pred_region
    _
  $region29: #{trace_wrapper_forward.3} parent=0 // pred_fallthru
    _

</llo_original>
